<compile_context>
chip_gen: v7x
topology: tpu7x:2x2x1
jax: 0.10.0
libtpu: 0.0.40
codegen_flags: <defaults>
</compile_context>

<pallas_src>
import math

import jax
import jax.numpy as jnp
from jax.experimental import pallas as pl
from jax.experimental.pallas import tpu as pltpu


def mlp_kernel(x_ref, w1_ref, b1_ref, w2_ref, b2_ref, w3_ref, b3_ref, o_ref):
    # Cast activations to bf16 in-kernel (keeps the wrapper cast-free); MXU matmuls
    # accumulate in f32, bias-add / ReLU run in f32 on the VPU.
    x = x_ref[...].astype(jnp.bfloat16)
    h = jnp.dot(x, w1_ref[...], preferred_element_type=jnp.float32)
    h = jnp.maximum(h + b1_ref[...], 0.0)
    h = jnp.dot(h.astype(jnp.bfloat16), w2_ref[...],
                preferred_element_type=jnp.float32)
    h = jnp.maximum(h + b2_ref[...], 0.0)
    out = jnp.dot(h.astype(jnp.bfloat16), w3_ref[...],
                  preferred_element_type=jnp.float32)
    o_ref[...] = (out + b3_ref[...]).astype(o_ref.dtype)


def _round_up(n, m):
    return ((n + m - 1) // m) * m


def _choose_batch_tiling(B, *, single_step_max=512, max_tile=1024):
    """Return (padded_batch, tile). Small B -> one grid step (overhead-bound);
    large B -> tiles of <= max_tile rows with >= 2 steps (lets v7x megacore split)."""
    Bp = _round_up(B, 8)
    if Bp <= single_step_max:
        return Bp, Bp
    n_steps = max(2, -(-Bp // max_tile))
    tile = _round_up(-(-Bp // n_steps), 8)
    return n_steps * tile, tile


def prepare_params(params):
    """One-time parameter prep (do this at init/load time, NOT per forward call):
    weights -> bf16 [in, out]; biases -> f32 shape (1, out). No padding needed."""
    prep = {}
    for i in (1, 2, 3):
        prep[f"w{i}"] = jnp.asarray(params[f"w{i}"], jnp.bfloat16)
        prep[f"b{i}"] = jnp.asarray(params[f"b{i}"], jnp.float32).reshape(1, -1)
    return prep


def mlp_forward(x, prepared):
    """x: [B, input_dim] float32. prepared: output of prepare_params()."""
    w1, b1 = prepared["w1"], prepared["b1"]
    w2, b2 = prepared["w2"], prepared["b2"]
    w3, b3 = prepared["w3"], prepared["b3"]

    B, in_dim = x.shape
    h1 = w1.shape[1]
    h2 = w2.shape[1]
    out_dim = w3.shape[1]

    Bp, TB = _choose_batch_tiling(B)
    x_p = x if Bp == B else jnp.pad(x, ((0, Bp - B), (0, 0)))
    grid = (Bp // TB,)

    # Advisory cost hint for the XLA scheduler.
    flops = 2 * Bp * (in_dim * h1 + h1 * h2 + h2 * out_dim)
    bytes_accessed = (
        x_p.size * x_p.dtype.itemsize
        + sum(a.size * a.dtype.itemsize for a in (w1, b1, w2, b2, w3, b3))
        + Bp * out_dim * x.dtype.itemsize
    )

    # Weights/biases: constant index_map -> resident in VMEM across grid steps.
    # All their block dims equal the full array dims, so no (8,128) padding needed.
    resident = lambda shape: pl.BlockSpec(shape, lambda i: (0,) * len(shape))

    out = pl.pallas_call(
        mlp_kernel,
        out_shape=jax.ShapeDtypeStruct((Bp, out_dim), x.dtype),
        grid=grid,
        in_specs=[
            pl.BlockSpec((TB, in_dim), lambda i: (i, 0)),   # x: tiled over batch
            resident((in_dim, h1)), resident((1, h1)),       # layer-1 weight/bias
            resident((h1, h2)), resident((1, h2)),           # layer-2 weight/bias
            resident((h2, out_dim)), resident((1, out_dim)), # output weight/bias
        ],
        out_specs=pl.BlockSpec((TB, out_dim), lambda i: (i, 0)),
        compiler_params=pltpu.CompilerParams(
            dimension_semantics=("parallel",)),
        cost_estimate=pl.CostEstimate(flops=flops, transcendentals=0,
                                      bytes_accessed=bytes_accessed),
    )(x_p, w1, b1, w2, b2, w3, b3)

    return out if Bp == B else out[:B]


def init_linear(key, in_dim, out_dim):
    """Deterministic init mimicking PyTorch nn.Linear default (uniform +-1/sqrt(in))."""
    kw, kb = jax.random.split(key)
    bound = 1.0 / math.sqrt(in_dim)
    # Stored as [in_dim, out_dim] so the kernel computes x @ W.
    w = jax.random.uniform(kw, (in_dim, out_dim), jnp.float32, -bound, bound)
    b = jax.random.uniform(kb, (out_dim,), jnp.float32, -bound, bound)
    return w, b


if __name__ == "__main__":
    INPUT_DIM = 32
    HIDDEN = (256, 256)   # module default hidden_layers
    OUTPUT_DIM = 8
    BATCH = 300           # non-multiple of 8: exercises the (only remaining) batch pad

    root = jax.random.PRNGKey(0)
    kx, k1, k2, k3 = jax.random.split(root, 4)

    x = jax.random.normal(kx, (BATCH, INPUT_DIM), jnp.float32)
    w1, b1 = init_linear(k1, INPUT_DIM, HIDDEN[0])
    w2, b2 = init_linear(k2, HIDDEN[0], HIDDEN[1])
    w3, b3 = init_linear(k3, HIDDEN[1], OUTPUT_DIM)
    params = {"w1": w1, "b1": b1, "w2": w2, "b2": b2, "w3": w3, "b3": b3}

    # Prepare (cast/layout) the parameters ONCE, outside the hot path.
    prepared = prepare_params(params)
    forward = jax.jit(mlp_forward)

    out = forward(x, prepared)
    out = jax.block_until_ready(out)

    # Reference check in plain JAX f32 (same math as the torch nn.Sequential forward).
    # Tolerance relaxed because the kernel's matmul operands are bf16 (f32 accumulation).
    ref = x
    ref = jnp.maximum(ref @ w1 + b1, 0.0)
    ref = jnp.maximum(ref @ w2 + b2, 0.0)
    ref = ref @ w3 + b3
    assert out.shape == (BATCH, OUTPUT_DIM)
    assert jnp.allclose(out, ref, atol=1e-1, rtol=5e-2), (
        float(jnp.max(jnp.abs(out - ref))))

    print("KERNEL_OK")
</pallas_src>

<mosaic_0001>
module attributes {stable_mosaic.version = 11 : i64} {
  func.func @mlp_kernel(%arg0: i32, %arg1: memref<304x32xf32, #tpu.memory_space<vmem>>, %arg2: memref<32x256xbf16, #tpu.memory_space<vmem>>, %arg3: memref<1x256xf32, #tpu.memory_space<vmem>>, %arg4: memref<256x256xbf16, #tpu.memory_space<vmem>>, %arg5: memref<1x256xf32, #tpu.memory_space<vmem>>, %arg6: memref<256x8xbf16, #tpu.memory_space<vmem>>, %arg7: memref<1x8xf32, #tpu.memory_space<vmem>>, %arg8: memref<304x8xf32, #tpu.memory_space<vmem>>) attributes {dimension_semantics = [#tpu.dimension_semantics<parallel>], iteration_bounds = array<i64: 1>, scalar_prefetch = 0 : i64, scratch_operands = 0 : i64, tpu.core_type = #tpu.core_type<tc>, window_params = [{transform_indices = @transform_0, window_bounds = array<i64: 304, 32>}, {pipeline_mode = #tpu.pipeline_mode<synchronous>, transform_indices = @transform_1, window_bounds = array<i64: 32, 256>}, {pipeline_mode = #tpu.pipeline_mode<synchronous>, transform_indices = @transform_2, window_bounds = array<i64: 1, 256>}, {pipeline_mode = #tpu.pipeline_mode<synchronous>, transform_indices = @transform_3, window_bounds = array<i64: 256, 256>}, {pipeline_mode = #tpu.pipeline_mode<synchronous>, transform_indices = @transform_4, window_bounds = array<i64: 1, 256>}, {pipeline_mode = #tpu.pipeline_mode<synchronous>, transform_indices = @transform_5, window_bounds = array<i64: 256, 8>}, {pipeline_mode = #tpu.pipeline_mode<synchronous>, transform_indices = @transform_6, window_bounds = array<i64: 1, 8>}, {transform_indices = @transform_7, window_bounds = array<i64: 304, 8>}]} {
    %c0 = arith.constant 0 : index
    %c0_0 = arith.constant 0 : index
    %0 = vector.load %arg1[%c0, %c0_0] : memref<304x32xf32, #tpu.memory_space<vmem>>, vector<304x32xf32>
    %1 = arith.truncf %0 : vector<304x32xf32> to vector<304x32xbf16>
    %c0_1 = arith.constant 0 : index
    %c0_2 = arith.constant 0 : index
    %2 = vector.load %arg2[%c0_1, %c0_2] : memref<32x256xbf16, #tpu.memory_space<vmem>>, vector<32x256xbf16>
    %cst = arith.constant dense<0.000000e+00> : vector<304x256xf32>
    %3 = tpu.matmul %1, %2, %cst {dimension_numbers = #tpu.dot_dimension_numbers<[1], [0], [0], [1], [0, 0, 1, 1], [], []>} : vector<304x32xbf16>, vector<32x256xbf16>, vector<304x256xf32> -> vector<304x256xf32>
    %c0_3 = arith.constant 0 : index
    %c0_4 = arith.constant 0 : index
    %4 = vector.load %arg3[%c0_3, %c0_4] : memref<1x256xf32, #tpu.memory_space<vmem>>, vector<1x256xf32>
    %5 = vector.broadcast %4 : vector<1x256xf32> to vector<304x256xf32>
    %6 = arith.addf %3, %5 : vector<304x256xf32>
    %cst_5 = arith.constant 0.000000e+00 : f32
    %7 = vector.broadcast %cst_5 : f32 to vector<304x256xf32>
    %8 = arith.maximumf %6, %7 : vector<304x256xf32>
    %9 = arith.truncf %8 : vector<304x256xf32> to vector<304x256xbf16>
    %c0_6 = arith.constant 0 : index
    %c0_7 = arith.constant 0 : index
    %10 = vector.load %arg4[%c0_6, %c0_7] : memref<256x256xbf16, #tpu.memory_space<vmem>>, vector<256x256xbf16>
    %cst_8 = arith.constant dense<0.000000e+00> : vector<304x256xf32>
    %11 = tpu.matmul %9, %10, %cst_8 {dimension_numbers = #tpu.dot_dimension_numbers<[1], [0], [0], [1], [0, 0, 1, 1], [], []>} : vector<304x256xbf16>, vector<256x256xbf16>, vector<304x256xf32> -> vector<304x256xf32>
    %c0_9 = arith.constant 0 : index
    %c0_10 = arith.constant 0 : index
    %12 = vector.load %arg5[%c0_9, %c0_10] : memref<1x256xf32, #tpu.memory_space<vmem>>, vector<1x256xf32>
    %13 = vector.broadcast %12 : vector<1x256xf32> to vector<304x256xf32>
    %14 = arith.addf %11, %13 : vector<304x256xf32>
    %cst_11 = arith.constant 0.000000e+00 : f32
    %15 = vector.broadcast %cst_11 : f32 to vector<304x256xf32>
    %16 = arith.maximumf %14, %15 : vector<304x256xf32>
    %17 = arith.truncf %16 : vector<304x256xf32> to vector<304x256xbf16>
    %c0_12 = arith.constant 0 : index
    %c0_13 = arith.constant 0 : index
    %18 = vector.load %arg6[%c0_12, %c0_13] : memref<256x8xbf16, #tpu.memory_space<vmem>>, vector<256x8xbf16>
    %cst_14 = arith.constant dense<0.000000e+00> : vector<304x8xf32>
    %19 = tpu.matmul %17, %18, %cst_14 {dimension_numbers = #tpu.dot_dimension_numbers<[1], [0], [0], [1], [0, 0, 1, 1], [], []>} : vector<304x256xbf16>, vector<256x8xbf16>, vector<304x8xf32> -> vector<304x8xf32>
    %c0_15 = arith.constant 0 : index
    %c0_16 = arith.constant 0 : index
    %20 = vector.load %arg7[%c0_15, %c0_16] : memref<1x8xf32, #tpu.memory_space<vmem>>, vector<1x8xf32>
    %21 = vector.broadcast %20 : vector<1x8xf32> to vector<304x8xf32>
    %22 = arith.addf %19, %21 : vector<304x8xf32>
    %c0_17 = arith.constant 0 : index
    %c0_18 = arith.constant 0 : index
    %23 = vector.load %arg8[%c0_17, %c0_18] : memref<304x8xf32, #tpu.memory_space<vmem>>, vector<304x8xf32>
    tpu.vector_store %arg8[%c0_17, %c0_18], %22 {strides = array<i32>} : memref<304x8xf32, #tpu.memory_space<vmem>>, vector<304x8xf32>,
    return
  }
  func.func @transform_0(%arg0: i32) -> (i32, i32) {
    %c0_i32 = arith.constant 0 : i32
    %c0_i32_0 = arith.constant 0 : i32
    return %arg0, %c0_i32 : i32, i32
  }
  func.func @transform_1(%arg0: i32) -> (i32, i32) {
    %c0_i32 = arith.constant 0 : i32
    %c0_i32_0 = arith.constant 0 : i32
    %c0_i32_1 = arith.constant 0 : i32
    return %c0_i32, %c0_i32_0 : i32, i32
  }
  func.func @transform_2(%arg0: i32) -> (i32, i32) {
    %c0_i32 = arith.constant 0 : i32
    %c0_i32_0 = arith.constant 0 : i32
    %c0_i32_1 = arith.constant 0 : i32
    return %c0_i32, %c0_i32_0 : i32, i32
  }
  func.func @transform_3(%arg0: i32) -> (i32, i32) {
    %c0_i32 = arith.constant 0 : i32
    %c0_i32_0 = arith.constant 0 : i32
    %c0_i32_1 = arith.constant 0 : i32
    return %c0_i32, %c0_i32_0 : i32, i32
  }
  func.func @transform_4(%arg0: i32) -> (i32, i32) {
    %c0_i32 = arith.constant 0 : i32
    %c0_i32_0 = arith.constant 0 : i32
    %c0_i32_1 = arith.constant 0 : i32
    return %c0_i32, %c0_i32_0 : i32, i32
  }
  func.func @transform_5(%arg0: i32) -> (i32, i32) {
    %c0_i32 = arith.constant 0 : i32
    %c0_i32_0 = arith.constant 0 : i32
    %c0_i32_1 = arith.constant 0 : i32
    return %c0_i32, %c0_i32_0 : i32, i32
  }
  func.func @transform_6(%arg0: i32) -> (i32, i32) {
    %c0_i32 = arith.constant 0 : i32
    %c0_i32_0 = arith.constant 0 : i32
    %c0_i32_1 = arith.constant 0 : i32
    return %c0_i32, %c0_i32_0 : i32, i32
  }
  func.func @transform_7(%arg0: i32) -> (i32, i32) {
    %c0_i32 = arith.constant 0 : i32
    %c0_i32_0 = arith.constant 0 : i32
    return %arg0, %c0_i32 : i32, i32
  }
}

</mosaic_0001>

<llo_original>
// kernel: mlp_forward.1
$region0: #{mlp_forward.1}
  #allocation0 [shape = 'u32[]', space=smem, size = 0x4, offset = 0x4, fixed_abs, tag = 'smem constant byte address 0x4 - core index']
  #allocation1 [shape = 'u32[144,128]{1,0:T(1,128)}', space=vmem, size = 0x12000, scoped, tag = 'internal scratch']
  %s0 = inlined_call_operand.vmem [shape: f32[304,32], index: 0, kind: input, shape index: {}]
  %s1 = inlined_call_operand.vmem [shape: bf16[32,256], index: 1, kind: input, shape index: {}]
  %s2 = inlined_call_operand.vmem [shape: f32[1,256], index: 2, kind: input, shape index: {}]
  %s3 = inlined_call_operand.vmem [shape: bf16[256,256], index: 3, kind: input, shape index: {}]
  %s4 = inlined_call_operand.vmem [shape: f32[1,256], index: 4, kind: input, shape index: {}]
  %s5 = inlined_call_operand.vmem [shape: bf16[256,8], index: 5, kind: input, shape index: {}]
  %s6 = inlined_call_operand.vmem [shape: f32[1,8], index: 6, kind: input, shape index: {}]
  %s7 = inlined_call_operand.vmem [shape: f32[304,8], index: 7, kind: output, shape index: {}]
  %s8 = sld [smem:[#allocation0]]
  $region38: #{mlp_forward.1} parent=0
    _
  %s10 = ssub.s32 1, %s8
  %s11 = scalar_select 0, %s10, %s8
  // Predicated region
  $region2: #{mlp_forward.1} parent=0 // pred_check
    _
  $region3: #{mlp_forward.1} parent=0 // pred_check_branch
    %13 = sbr.rel (0) target = $region5
  $region4: #{mlp_forward.1} parent=0 // pred_region
    _
  $region5: #{mlp_forward.1} parent=0 // pred_fallthru
    _
  // Predicated region
  $region6: #{mlp_forward.1} parent=0 // pred_check
    _
  $region7: #{mlp_forward.1} parent=0 // pred_check_branch
    %15 = sbr.rel (0) target = $region9
  $region8: #{mlp_forward.1} parent=0 // pred_region
    _
  $region9: #{mlp_forward.1} parent=0 // pred_fallthru
    _
  // Predicated region
  $region10: #{mlp_forward.1} parent=0 // pred_check
    _
  $region11: #{mlp_forward.1} parent=0 // pred_check_branch
    %17 = sbr.rel (0) target = $region13
  $region12: #{mlp_forward.1} parent=0 // pred_region
    _
  $region13: #{mlp_forward.1} parent=0 // pred_fallthru
    _
  // Predicated region
  $region14: #{mlp_forward.1} parent=0 // pred_check
    _
  $region15: #{mlp_forward.1} parent=0 // pred_check_branch
    %19 = sbr.rel (0) target = $region17
  $region16: #{mlp_forward.1} parent=0 // pred_region
    _
  $region17: #{mlp_forward.1} parent=0 // pred_fallthru
    _
  // Predicated region
  $region18: #{mlp_forward.1} parent=0 // pred_check
    _
  $region19: #{mlp_forward.1} parent=0 // pred_check_branch
    %21 = sbr.rel (0) target = $region21
  $region20: #{mlp_forward.1} parent=0 // pred_region
    _
  $region21: #{mlp_forward.1} parent=0 // pred_fallthru
    _
  // Predicated region
  $region22: #{mlp_forward.1} parent=0 // pred_check
    _
  $region23: #{mlp_forward.1} parent=0 // pred_check_branch
    %23 = sbr.rel (0) target = $region25
  $region24: #{mlp_forward.1} parent=0 // pred_region
    _
  $region25: #{mlp_forward.1} parent=0 // pred_fallthru
    _
  // Predicated region
  $region26: #{mlp_forward.1} parent=0 // pred_check
    _
  $region27: #{mlp_forward.1} parent=0 // pred_check_branch
    %25 = sbr.rel (0) target = $region29
  $region28: #{mlp_forward.1} parent=0 // pred_region
    _
  $region29: #{mlp_forward.1} parent=0 // pred_fallthru
    _
  %v27 = vld [vmem:[%s0] sm:$0xff]
  %v28 = vld [vmem:[%s0 + $0x8] sm:$0xff]
  %v29 = vld [vmem:[%s0 + $0x10] sm:$0xff]
  %v30 = vld [vmem:[%s0 + $0x18] sm:$0xff]
  %v31 = vld [vmem:[%s0 + $0x20] sm:$0xff]
  %v32 = vld [vmem:[%s0 + $0x28] sm:$0xff]
  %v33 = vld [vmem:[%s0 + $0x30] sm:$0xff]
  %v34 = vld [vmem:[%s0 + $0x38] sm:$0xff]
  %v35 = vld [vmem:[%s0 + $0x40] sm:$0xff]
  %v36 = vld [vmem:[%s0 + $0x48] sm:$0xff]
  %v37 = vld [vmem:[%s0 + $0x50] sm:$0xff]
  %v38 = vld [vmem:[%s0 + $0x58] sm:$0xff]
  %v39 = vld [vmem:[%s0 + $0x60] sm:$0xff]
  %v40 = vld [vmem:[%s0 + $0x68] sm:$0xff]
  %v41 = vld [vmem:[%s0 + $0x70] sm:$0xff]
  %v42 = vld [vmem:[%s0 + $0x78] sm:$0xff]
  %v43 = vld [vmem:[%s0 + $0x80] sm:$0xff]
  %v44 = vld [vmem:[%s0 + $0x88] sm:$0xff]
  %v45 = vld [vmem:[%s0 + $0x90] sm:$0xff]
  %v46 = vld [vmem:[%s0 + $0x98] sm:$0xff]
  %v47 = vld [vmem:[%s0 + $0xa0] sm:$0xff]
  %v48 = vld [vmem:[%s0 + $0xa8] sm:$0xff]
  %v49 = vld [vmem:[%s0 + $0xb0] sm:$0xff]
  %v50 = vld [vmem:[%s0 + $0xb8] sm:$0xff]
  %v51 = vld [vmem:[%s0 + $0xc0] sm:$0xff]
  %v52 = vld [vmem:[%s0 + $0xc8] sm:$0xff]
  %v53 = vld [vmem:[%s0 + $0xd0] sm:$0xff]
  %v54 = vld [vmem:[%s0 + $0xd8] sm:$0xff]
  %v55 = vld [vmem:[%s0 + $0xe0] sm:$0xff]
  %v56 = vld [vmem:[%s0 + $0xe8] sm:$0xff]
  %v57 = vld [vmem:[%s0 + $0xf0] sm:$0xff]
  %v58 = vld [vmem:[%s0 + $0xf8] sm:$0xff]
  %v59 = vld [vmem:[%s0 + $0x100] sm:$0xff]
  %v60 = vld [vmem:[%s0 + $0x108] sm:$0xff]
  %v61 = vld [vmem:[%s0 + $0x110] sm:$0xff]
  %v62 = vld [vmem:[%s0 + $0x118] sm:$0xff]
  %v63 = vld [vmem:[%s0 + $0x120] sm:$0xff]
  %v64 = vld [vmem:[%s0 + $0x128] sm:$0xff]
  %v65 = vpack.c.bf16 %v28, %v27
  %v66 = vpack.c.bf16 %v30, %v29
  %v67 = vpack.c.bf16 %v32, %v31
  %v68 = vpack.c.bf16 %v34, %v33
  %v69 = vpack.c.bf16 %v36, %v35
  %v70 = vpack.c.bf16 %v38, %v37
  %v71 = vpack.c.bf16 %v40, %v39
  %v72 = vpack.c.bf16 %v42, %v41
  %v73 = vpack.c.bf16 %v44, %v43
  %v74 = vpack.c.bf16 %v46, %v45
  %v75 = vpack.c.bf16 %v48, %v47
  %v76 = vpack.c.bf16 %v50, %v49
  %v77 = vpack.c.bf16 %v52, %v51
  %v78 = vpack.c.bf16 %v54, %v53
  %v79 = vpack.c.bf16 %v56, %v55
  %v80 = vpack.c.bf16 %v58, %v57
  %v81 = vpack.c.bf16 %v60, %v59
  %v82 = vpack.c.bf16 %v62, %v61
  %v83 = vpack.c.bf16 %v64, %v63
  %v84 = vld [vmem:[%s1] sm:$0xff]
  %v85 = vld [vmem:[%s1 + $0x8] sm:$0xff]
  %v86 = vld [vmem:[%s1 + $0x10] sm:$0xff]
  %v87 = vld [vmem:[%s1 + $0x18] sm:$0xff]
  %v88 = vld [vmem:[%s2] sm:$0x3]
  %v90 = vlaneseq
  %v91 = vshrl.u32 %v90, 7
  %v92 = vsub.s32 0, %v91
  %v93 = vrot.slane %v88, %v92
  %v94 = vlaneseq
  %v95 = vshrl.u32 %v94, 7
  %v96 = vsub.s32 1, %v95
  %v97 = vrot.slane %v88, %v96
  %v104 = vunpack.c.l.b16 %v84
  %v105 = vunpack.c.h.b16 %v84
  %v106 = vunpack.c.l.b16 %v85
  %v107 = vunpack.c.h.b16 %v85
  %v108 = vunpack.c.l.b16 %v86
  %v109 = vunpack.c.h.b16 %v86
  %v110 = vunpack.c.l.b16 %v87
  %v111 = vunpack.c.h.b16 %v87
  %v112 = vpack.c.b16 %v106, %v104
  %v113 = vpack.c.b16 %v107, %v105
  %v114 = vpack.c.b16 %v110, %v108
  %v115 = vpack.c.b16 %v111, %v109
  %vm120 = vcmask 261120
  %v122 = vsel %vm120, %v65, 0
  %v125 = vsel %vm120, %v66, 0
  %v128 = vsel %vm120, %v67, 0
  %v131 = vsel %vm120, %v68, 0
  %v134 = vsel %vm120, %v69, 0
  %v137 = vsel %vm120, %v70, 0
  %v140 = vsel %vm120, %v71, 0
  %v143 = vsel %vm120, %v72, 0
  %v146 = vsel %vm120, %v73, 0
  %v149 = vsel %vm120, %v74, 0
  %v152 = vsel %vm120, %v75, 0
  %v155 = vsel %vm120, %v76, 0
  %v158 = vsel %vm120, %v77, 0
  %v161 = vsel %vm120, %v78, 0
  %v164 = vsel %vm120, %v79, 0
  %v167 = vsel %vm120, %v80, 0
  %v170 = vsel %vm120, %v81, 0
  %v173 = vsel %vm120, %v82, 0
  %v176 = vsel %vm120, %v83, 0
  %178 = vmatprep.subr.bf16.mxu0 %v113
  %179 = vmatpush1.bf16.msra.mxu0 %v112
  %180 = vmatprep.subr.bf16.mxu0 %v115
  %181 = vmatpush1.bf16.msra.mxu0 %v114
  %182 = vmatprep.subr.bf16.mxu0 0
  %183 = vmatpush1.bf16.msra.mxu0 0
  %184 = vmatprep.subr.bf16.mxu0 0
  %185 = vmatpush1.bf16.msra.mxu0 0
  %186 = vmatprep.subr.bf16.mxu0 0
  %187 = vmatpush1.bf16.msra.mxu0 0
  %188 = vmatprep.subr.bf16.mxu0 0
  %189 = vmatpush1.bf16.msra.mxu0 0
  %190 = vmatprep.subr.bf16.mxu0 0
  %191 = vmatpush1.bf16.msra.mxu0 0
  %192 = vmatprep.subr.bf16.mxu0 0
  %193 = vmatpush1.bf16.msra.mxu0 0
  %194 = vmatprep.subr.bf16.mxu0 0
  %195 = vmatpush1.bf16.msra.mxu0 0
  %196 = vmatprep.subr.bf16.mxu0 0
  %197 = vmatpush1.bf16.msra.mxu0 0
  %198 = vmatprep.subr.bf16.mxu0 0
  %199 = vmatpush1.bf16.msra.mxu0 0
  %200 = vmatprep.subr.bf16.mxu0 0
  %201 = vmatpush1.bf16.msra.mxu0 0
  %202 = vmatprep.subr.bf16.mxu0 0
  %203 = vmatpush1.bf16.msra.mxu0 0
  %204 = vmatprep.subr.bf16.mxu0 0
  %205 = vmatpush1.bf16.msra.mxu0 0
  %206 = vmatprep.subr.bf16.mxu0 0
  %207 = vmatpush1.bf16.msra.mxu0 0
  %208 = vmatprep.subr.bf16.mxu0 0
  %209 = vmatpush1.bf16.msra.mxu0 0
  %210 = vmatprep.mubr.bf16.mxu0 0
  %211 = vmatmul.mubr.bf16.gmra.mrb[0].mxu0 %v122
  %v212 = vpop.f32.mrb[0].mxu0
  %v213 = vadd.f32 %v93, %v212
  %v214 = vpop.f32.mrb[0].mxu0
  %v215 = vadd.f32 %v97, %v214
  %v216 = vpop.f32.mrb[0].mxu0
  %v217 = vadd.f32 %v93, %v216
  %v218 = vpop.f32.mrb[0].mxu0
  %v219 = vadd.f32 %v97, %v218
  %220 = vmatprep.mubr.bf16.mxu0 0
  %221 = vmatmul.mubr.bf16.gmra.mrb[0].mxu0 %v125
  %v222 = vpop.f32.mrb[0].mxu0
  %v223 = vadd.f32 %v93, %v222
  %v224 = vpop.f32.mrb[0].mxu0
  %v225 = vadd.f32 %v97, %v224
  %v226 = vpop.f32.mrb[0].mxu0
  %v227 = vadd.f32 %v93, %v226
  %v228 = vpop.f32.mrb[0].mxu0
  %v229 = vadd.f32 %v97, %v228
  %230 = vmatprep.mubr.bf16.mxu0 0
  %231 = vmatmul.mubr.bf16.gmra.mrb[0].mxu0 %v128
  %v232 = vpop.f32.mrb[0].mxu0
  %v233 = vadd.f32 %v93, %v232
  %v234 = vpop.f32.mrb[0].mxu0
  %v235 = vadd.f32 %v97, %v234
  %v236 = vpop.f32.mrb[0].mxu0
  %v237 = vadd.f32 %v93, %v236
  %v238 = vpop.f32.mrb[0].mxu0
  %v239 = vadd.f32 %v97, %v238
  %240 = vmatprep.mubr.bf16.mxu0 0
  %241 = vmatmul.mubr.bf16.gmra.mrb[0].mxu0 %v131
  %v242 = vpop.f32.mrb[0].mxu0
  %v243 = vadd.f32 %v93, %v242
  %v244 = vpop.f32.mrb[0].mxu0
  %v245 = vadd.f32 %v97, %v244
  %v246 = vpop.f32.mrb[0].mxu0
  %v247 = vadd.f32 %v93, %v246
  %v248 = vpop.f32.mrb[0].mxu0
  %v249 = vadd.f32 %v97, %v248
  %250 = vmatprep.mubr.bf16.mxu0 0
  %251 = vmatmul.mubr.bf16.gmra.mrb[0].mxu0 %v134
  %v252 = vpop.f32.mrb[0].mxu0
  %v253 = vadd.f32 %v93, %v252
  %v254 = vpop.f32.mrb[0].mxu0
  %v255 = vadd.f32 %v97, %v254
  %v256 = vpop.f32.mrb[0].mxu0
  %v257 = vadd.f32 %v93, %v256
  %v258 = vpop.f32.mrb[0].mxu0
  %v259 = vadd.f32 %v97, %v258
  %260 = vmatprep.mubr.bf16.mxu0 0
  %261 = vmatmul.mubr.bf16.gmra.mrb[0].mxu0 %v137
  %v262 = vpop.f32.mrb[0].mxu0
  %v263 = vadd.f32 %v93, %v262
  %v264 = vpop.f32.mrb[0].mxu0
  %v265 = vadd.f32 %v97, %v264
  %v266 = vpop.f32.mrb[0].mxu0
  %v267 = vadd.f32 %v93, %v266
  %v268 = vpop.f32.mrb[0].mxu0
  %v269 = vadd.f32 %v97, %v268
  %270 = vmatprep.mubr.bf16.mxu0 0
  %271 = vmatmul.mubr.bf16.gmra.mrb[0].mxu0 %v140
  %v272 = vpop.f32.mrb[0].mxu0
  %v273 = vadd.f32 %v93, %v272
  %v274 = vpop.f32.mrb[0].mxu0
  %v275 = vadd.f32 %v97, %v274
  %v276 = vpop.f32.mrb[0].mxu0
  %v277 = vadd.f32 %v93, %v276
  %v278 = vpop.f32.mrb[0].mxu0
  %v279 = vadd.f32 %v97, %v278
  %280 = vmatprep.mubr.bf16.mxu0 0
  %281 = vmatmul.mubr.bf16.gmra.mrb[0].mxu0 %v143
  %v282 = vpop.f32.mrb[0].mxu0
  %v283 = vadd.f32 %v93, %v282
  %v284 = vpop.f32.mrb[0].mxu0
  %v285 = vadd.f32 %v97, %v284
  %v286 = vpop.f32.mrb[0].mxu0
  %v287 = vadd.f32 %v93, %v286
  %v288 = vpop.f32.mrb[0].mxu0
  %v289 = vadd.f32 %v97, %v288
  %290 = vmatprep.mubr.bf16.mxu0 0
  %291 = vmatmul.mubr.bf16.gmra.mrb[0].mxu0 %v146
  %v292 = vpop.f32.mrb[0].mxu0
  %v293 = vadd.f32 %v93, %v292
  %v294 = vpop.f32.mrb[0].mxu0
  %v295 = vadd.f32 %v97, %v294
  %v296 = vpop.f32.mrb[0].mxu0
  %v297 = vadd.f32 %v93, %v296
  %v298 = vpop.f32.mrb[0].mxu0
  %v299 = vadd.f32 %v97, %v298
  %300 = vmatprep.mubr.bf16.mxu0 0
  %301 = vmatmul.mubr.bf16.gmra.mrb[0].mxu0 %v149
  %v302 = vpop.f32.mrb[0].mxu0
  %v303 = vadd.f32 %v93, %v302
  %v304 = vpop.f32.mrb[0].mxu0
  %v305 = vadd.f32 %v97, %v304
  %v306 = vpop.f32.mrb[0].mxu0
  %v307 = vadd.f32 %v93, %v306
  %v308 = vpop.f32.mrb[0].mxu0
  %v309 = vadd.f32 %v97, %v308
  %310 = vmatprep.mubr.bf16.mxu0 0
  %311 = vmatmul.mubr.bf16.gmra.mrb[0].mxu0 %v152
  %v312 = vpop.f32.mrb[0].mxu0
  %v313 = vadd.f32 %v93, %v312
  %v314 = vpop.f32.mrb[0].mxu0
  %v315 = vadd.f32 %v97, %v314
  %v316 = vpop.f32.mrb[0].mxu0
  %v317 = vadd.f32 %v93, %v316
  %v318 = vpop.f32.mrb[0].mxu0
  %v319 = vadd.f32 %v97, %v318
  %320 = vmatprep.mubr.bf16.mxu0 0
  %321 = vmatmul.mubr.bf16.gmra.mrb[0].mxu0 %v155
  %v322 = vpop.f32.mrb[0].mxu0
  %v323 = vadd.f32 %v93, %v322
  %v324 = vpop.f32.mrb[0].mxu0
  %v325 = vadd.f32 %v97, %v324
  %v326 = vpop.f32.mrb[0].mxu0
  %v327 = vadd.f32 %v93, %v326
  %v328 = vpop.f32.mrb[0].mxu0
  %v329 = vadd.f32 %v97, %v328
  %330 = vmatprep.mubr.bf16.mxu0 0
  %331 = vmatmul.mubr.bf16.gmra.mrb[0].mxu0 %v158
  %v332 = vpop.f32.mrb[0].mxu0
  %v333 = vadd.f32 %v93, %v332
  %v334 = vpop.f32.mrb[0].mxu0
  %v335 = vadd.f32 %v97, %v334
  %v336 = vpop.f32.mrb[0].mxu0
  %v337 = vadd.f32 %v93, %v336
  %v338 = vpop.f32.mrb[0].mxu0
  %v339 = vadd.f32 %v97, %v338
  %340 = vmatprep.mubr.bf16.mxu0 0
  %341 = vmatmul.mubr.bf16.gmra.mrb[0].mxu0 %v161
  %v342 = vpop.f32.mrb[0].mxu0
  %v343 = vadd.f32 %v93, %v342
  %v344 = vpop.f32.mrb[0].mxu0
  %v345 = vadd.f32 %v97, %v344
  %v346 = vpop.f32.mrb[0].mxu0
  %v347 = vadd.f32 %v93, %v346
  %v348 = vpop.f32.mrb[0].mxu0
  %v349 = vadd.f32 %v97, %v348
  %350 = vmatprep.mubr.bf16.mxu0 0
  %351 = vmatmul.mubr.bf16.gmra.mrb[0].mxu0 %v164
  %v352 = vpop.f32.mrb[0].mxu0
  %v353 = vadd.f32 %v93, %v352
  %v354 = vpop.f32.mrb[0].mxu0
  %v355 = vadd.f32 %v97, %v354
  %v356 = vpop.f32.mrb[0].mxu0
  %v357 = vadd.f32 %v93, %v356
  %v358 = vpop.f32.mrb[0].mxu0
  %v359 = vadd.f32 %v97, %v358
  %360 = vmatprep.mubr.bf16.mxu0 0
  %361 = vmatmul.mubr.bf16.gmra.mrb[0].mxu0 %v167
  %v362 = vpop.f32.mrb[0].mxu0
  %v363 = vadd.f32 %v93, %v362
  %v364 = vpop.f32.mrb[0].mxu0
  %v365 = vadd.f32 %v97, %v364
  %v366 = vpop.f32.mrb[0].mxu0
  %v367 = vadd.f32 %v93, %v366
  %v368 = vpop.f32.mrb[0].mxu0
  %v369 = vadd.f32 %v97, %v368
  %370 = vmatprep.mubr.bf16.mxu0 0
  %371 = vmatmul.mubr.bf16.gmra.mrb[0].mxu0 %v170
  %v372 = vpop.f32.mrb[0].mxu0
  %v373 = vadd.f32 %v93, %v372
  %v374 = vpop.f32.mrb[0].mxu0
  %v375 = vadd.f32 %v97, %v374
  %v376 = vpop.f32.mrb[0].mxu0
  %v377 = vadd.f32 %v93, %v376
  %v378 = vpop.f32.mrb[0].mxu0
  %v379 = vadd.f32 %v97, %v378
  %380 = vmatprep.mubr.bf16.mxu0 0
  %381 = vmatmul.mubr.bf16.gmra.mrb[0].mxu0 %v173
  %v382 = vpop.f32.mrb[0].mxu0
  %v383 = vadd.f32 %v93, %v382
  %v384 = vpop.f32.mrb[0].mxu0
  %v385 = vadd.f32 %v97, %v384
  %v386 = vpop.f32.mrb[0].mxu0
  %v387 = vadd.f32 %v93, %v386
  %v388 = vpop.f32.mrb[0].mxu0
  %v389 = vadd.f32 %v97, %v388
  %390 = vmatprep.mubr.bf16.mxu0 0
  %391 = vmatmul.mubr.bf16.gmra.mrb[0].mxu0 %v176
  %v392 = vpop.f32.mrb[0].mxu0
  %v393 = vadd.f32 %v93, %v392
  %v394 = vpop.f32.mrb[0].mxu0
  %v395 = vadd.f32 %v97, %v394
  %v396 = vpop.f32.mrb[0].mxu0
  %v397 = vadd.f32 %v93, %v396
  %v398 = vpop.f32.mrb[0].mxu0
  %v399 = vadd.f32 %v97, %v398
  %400 = vdwg.mxu0
  %v401 = vmax.f32 %v213, 0.0
  %v402 = vmax.f32 %v215, 0.0
  %v403 = vmax.f32 %v217, 0.0
  %v404 = vmax.f32 %v219, 0.0
  %v405 = vmax.f32 %v223, 0.0
  %v406 = vmax.f32 %v225, 0.0
  %v407 = vmax.f32 %v227, 0.0
  %v408 = vmax.f32 %v229, 0.0
  %v409 = vmax.f32 %v233, 0.0
  %v410 = vmax.f32 %v235, 0.0
  %v411 = vmax.f32 %v237, 0.0
  %v412 = vmax.f32 %v239, 0.0
  %v413 = vmax.f32 %v243, 0.0
  %v414 = vmax.f32 %v245, 0.0
  %v415 = vmax.f32 %v247, 0.0
  %v416 = vmax.f32 %v249, 0.0
  %v417 = vmax.f32 %v253, 0.0
  %v418 = vmax.f32 %v255, 0.0
  %v419 = vmax.f32 %v257, 0.0
  %v420 = vmax.f32 %v259, 0.0
  %v421 = vmax.f32 %v263, 0.0
  %v422 = vmax.f32 %v265, 0.0
  %v423 = vmax.f32 %v267, 0.0
  %v424 = vmax.f32 %v269, 0.0
  %v425 = vmax.f32 %v273, 0.0
  %v426 = vmax.f32 %v275, 0.0
  %v427 = vmax.f32 %v277, 0.0
  %v428 = vmax.f32 %v279, 0.0
  %v429 = vmax.f32 %v283, 0.0
  %v430 = vmax.f32 %v285, 0.0
  %v431 = vmax.f32 %v287, 0.0
  %v432 = vmax.f32 %v289, 0.0
  %v433 = vmax.f32 %v293, 0.0
  %v434 = vmax.f32 %v295, 0.0
  %v435 = vmax.f32 %v297, 0.0
  %v436 = vmax.f32 %v299, 0.0
  %v437 = vmax.f32 %v303, 0.0
  %v438 = vmax.f32 %v305, 0.0
  %v439 = vmax.f32 %v307, 0.0
  %v440 = vmax.f32 %v309, 0.0
  %v441 = vmax.f32 %v313, 0.0
  %v442 = vmax.f32 %v315, 0.0
  %v443 = vmax.f32 %v317, 0.0
  %v444 = vmax.f32 %v319, 0.0
  %v445 = vmax.f32 %v323, 0.0
  %v446 = vmax.f32 %v325, 0.0
  %v447 = vmax.f32 %v327, 0.0
  %v448 = vmax.f32 %v329, 0.0
  %v449 = vmax.f32 %v333, 0.0
  %v450 = vmax.f32 %v335, 0.0
  %v451 = vmax.f32 %v337, 0.0
  %v452 = vmax.f32 %v339, 0.0
  %v453 = vmax.f32 %v343, 0.0
  %v454 = vmax.f32 %v345, 0.0
  %v455 = vmax.f32 %v347, 0.0
  %v456 = vmax.f32 %v349, 0.0
  %v457 = vmax.f32 %v353, 0.0
  %v458 = vmax.f32 %v355, 0.0
  %v459 = vmax.f32 %v357, 0.0
  %v460 = vmax.f32 %v359, 0.0
  %v461 = vmax.f32 %v363, 0.0
  %v462 = vmax.f32 %v365, 0.0
  %v463 = vmax.f32 %v367, 0.0
  %v464 = vmax.f32 %v369, 0.0
  %v465 = vmax.f32 %v373, 0.0
  %v466 = vmax.f32 %v375, 0.0
  %v467 = vmax.f32 %v377, 0.0
  %v468 = vmax.f32 %v379, 0.0
  %v469 = vmax.f32 %v383, 0.0
  %v470 = vmax.f32 %v385, 0.0
  %v471 = vmax.f32 %v387, 0.0
  %v472 = vmax.f32 %v389, 0.0
  %v473 = vmax.f32 %v393, 0.0
  %v474 = vmax.f32 %v395, 0.0
  %v475 = vmax.f32 %v397, 0.0
  %v476 = vmax.f32 %v399, 0.0
  %v477 = vpack.c.bf16 %v403, %v401
  %v478 = vpack.c.bf16 %v404, %v402
  %v479 = vpack.c.bf16 %v407, %v405
  %v480 = vpack.c.bf16 %v408, %v406
  %v481 = vpack.c.bf16 %v411, %v409
  %v482 = vpack.c.bf16 %v412, %v410
  %v483 = vpack.c.bf16 %v415, %v413
  %v484 = vpack.c.bf16 %v416, %v414
  %v485 = vpack.c.bf16 %v419, %v417
  %v486 = vpack.c.bf16 %v420, %v418
  %v487 = vpack.c.bf16 %v423, %v421
  %v488 = vpack.c.bf16 %v424, %v422
  %v489 = vpack.c.bf16 %v427, %v425
  %v490 = vpack.c.bf16 %v428, %v426
  %v491 = vpack.c.bf16 %v431, %v429
  %v492 = vpack.c.bf16 %v432, %v430
  %v493 = vpack.c.bf16 %v435, %v433
  %v494 = vpack.c.bf16 %v436, %v434
  %v495 = vpack.c.bf16 %v439, %v437
  %v496 = vpack.c.bf16 %v440, %v438
  %v497 = vpack.c.bf16 %v443, %v441
  %v498 = vpack.c.bf16 %v444, %v442
  %v499 = vpack.c.bf16 %v447, %v445
  %v500 = vpack.c.bf16 %v448, %v446
  %v501 = vpack.c.bf16 %v451, %v449
  %v502 = vpack.c.bf16 %v452, %v450
  %v503 = vpack.c.bf16 %v455, %v453
  %v504 = vpack.c.bf16 %v456, %v454
  %v505 = vpack.c.bf16 %v459, %v457
  %v506 = vpack.c.bf16 %v460, %v458
  %v507 = vpack.c.bf16 %v463, %v461
  %v508 = vpack.c.bf16 %v464, %v462
  %v509 = vpack.c.bf16 %v467, %v465
  %v510 = vpack.c.bf16 %v468, %v466
  %v511 = vpack.c.bf16 %v471, %v469
  %v512 = vpack.c.bf16 %v472, %v470
  %v513 = vpack.c.bf16 %v475, %v473
  %v514 = vpack.c.bf16 %v476, %v474
  %v515 = vld [vmem:[%s3] sm:$0xff]
  %v516 = vld [vmem:[%s3 + $0x8] sm:$0xff]
  %v517 = vld [vmem:[%s3 + $0x10] sm:$0xff]
  %v518 = vld [vmem:[%s3 + $0x18] sm:$0xff]
  %v519 = vld [vmem:[%s3 + $0x20] sm:$0xff]
  %v520 = vld [vmem:[%s3 + $0x28] sm:$0xff]
  %v521 = vld [vmem:[%s3 + $0x30] sm:$0xff]
  %v522 = vld [vmem:[%s3 + $0x38] sm:$0xff]
  %v523 = vld [vmem:[%s3 + $0x40] sm:$0xff]
  %v524 = vld [vmem:[%s3 + $0x48] sm:$0xff]
  %v525 = vld [vmem:[%s3 + $0x50] sm:$0xff]
  %v526 = vld [vmem:[%s3 + $0x58] sm:$0xff]
  %v527 = vld [vmem:[%s3 + $0x60] sm:$0xff]
  %v528 = vld [vmem:[%s3 + $0x68] sm:$0xff]
  %v529 = vld [vmem:[%s3 + $0x70] sm:$0xff]
  %v530 = vld [vmem:[%s3 + $0x78] sm:$0xff]
  %v531 = vld [vmem:[%s3 + $0x80] sm:$0xff]
  %v532 = vld [vmem:[%s3 + $0x88] sm:$0xff]
  %v533 = vld [vmem:[%s3 + $0x90] sm:$0xff]
  %v534 = vld [vmem:[%s3 + $0x98] sm:$0xff]
  %v535 = vld [vmem:[%s3 + $0xa0] sm:$0xff]
  %v536 = vld [vmem:[%s3 + $0xa8] sm:$0xff]
  %v537 = vld [vmem:[%s3 + $0xb0] sm:$0xff]
  %v538 = vld [vmem:[%s3 + $0xb8] sm:$0xff]
  %v539 = vld [vmem:[%s3 + $0xc0] sm:$0xff]
  %v540 = vld [vmem:[%s3 + $0xc8] sm:$0xff]
  %v541 = vld [vmem:[%s3 + $0xd0] sm:$0xff]
  %v542 = vld [vmem:[%s3 + $0xd8] sm:$0xff]
  %v543 = vld [vmem:[%s3 + $0xe0] sm:$0xff]
  %v544 = vld [vmem:[%s3 + $0xe8] sm:$0xff]
  %v545 = vld [vmem:[%s3 + $0xf0] sm:$0xff]
  %v546 = vld [vmem:[%s3 + $0xf8] sm:$0xff]
  %v547 = vld [vmem:[%s4] sm:$0x3]
  %v549 = vlaneseq
  %v550 = vshrl.u32 %v549, 7
  %v551 = vsub.s32 0, %v550
  %v552 = vrot.slane %v547, %v551
  %v553 = vlaneseq
  %v554 = vshrl.u32 %v553, 7
  %v555 = vsub.s32 1, %v554
  %v556 = vrot.slane %v547, %v555
  %v591 = vunpack.c.l.b16 %v515
  %v592 = vunpack.c.h.b16 %v515
  %v593 = vunpack.c.l.b16 %v516
  %v594 = vunpack.c.h.b16 %v516
  %v595 = vunpack.c.l.b16 %v517
  %v596 = vunpack.c.h.b16 %v517
  %v597 = vunpack.c.l.b16 %v518
  %v598 = vunpack.c.h.b16 %v518
  %v599 = vunpack.c.l.b16 %v519
  %v600 = vunpack.c.h.b16 %v519
  %v601 = vunpack.c.l.b16 %v520
  %v602 = vunpack.c.h.b16 %v520
  %v603 = vunpack.c.l.b16 %v521
  %v604 = vunpack.c.h.b16 %v521
  %v605 = vunpack.c.l.b16 %v522
  %v606 = vunpack.c.h.b16 %v522
  %v607 = vunpack.c.l.b16 %v523
  %v608 = vunpack.c.h.b16 %v523
  %v609 = vunpack.c.l.b16 %v524
  %v610 = vunpack.c.h.b16 %v524
  %v611 = vunpack.c.l.b16 %v525
  %v612 = vunpack.c.h.b16 %v525
  %v613 = vunpack.c.l.b16 %v526
  %v614 = vunpack.c.h.b16 %v526
  %v615 = vunpack.c.l.b16 %v527
  %v616 = vunpack.c.h.b16 %v527
  %v617 = vunpack.c.l.b16 %v528
  %v618 = vunpack.c.h.b16 %v528
  %v619 = vunpack.c.l.b16 %v529
  %v620 = vunpack.c.h.b16 %v529
  %v621 = vunpack.c.l.b16 %v530
  %v622 = vunpack.c.h.b16 %v530
  %v623 = vunpack.c.l.b16 %v531
  %v624 = vunpack.c.h.b16 %v531
  %v625 = vunpack.c.l.b16 %v532
  %v626 = vunpack.c.h.b16 %v532
  %v627 = vunpack.c.l.b16 %v533
  %v628 = vunpack.c.h.b16 %v533
  %v629 = vunpack.c.l.b16 %v534
  %v630 = vunpack.c.h.b16 %v534
  %v631 = vunpack.c.l.b16 %v535
  %v632 = vunpack.c.h.b16 %v535
  %v633 = vunpack.c.l.b16 %v536
  %v634 = vunpack.c.h.b16 %v536
  %v635 = vunpack.c.l.b16 %v537
  %v636 = vunpack.c.h.b16 %v537
  %v637 = vunpack.c.l.b16 %v538
  %v638 = vunpack.c.h.b16 %v538
  %v639 = vunpack.c.l.b16 %v539
  %v640 = vunpack.c.h.b16 %v539
  %v641 = vunpack.c.l.b16 %v540
  %v642 = vunpack.c.h.b16 %v540
  %v643 = vunpack.c.l.b16 %v541
  %v644 = vunpack.c.h.b16 %v541
  %v645 = vunpack.c.l.b16 %v542
  %v646 = vunpack.c.h.b16 %v542
  %v647 = vunpack.c.l.b16 %v543
  %v648 = vunpack.c.h.b16 %v543
  %v649 = vunpack.c.l.b16 %v544
  %v650 = vunpack.c.h.b16 %v544
  %v651 = vunpack.c.l.b16 %v545
  %v652 = vunpack.c.h.b16 %v545
  %v653 = vunpack.c.l.b16 %v546
  %v654 = vunpack.c.h.b16 %v546
  %v655 = vpack.c.b16 %v593, %v591
  %v656 = vpack.c.b16 %v594, %v592
  %v657 = vpack.c.b16 %v597, %v595
  %v658 = vpack.c.b16 %v598, %v596
  %v659 = vpack.c.b16 %v601, %v599
  %v660 = vpack.c.b16 %v602, %v600
  %v661 = vpack.c.b16 %v605, %v603
  %v662 = vpack.c.b16 %v606, %v604
  %v663 = vpack.c.b16 %v609, %v607
  %v664 = vpack.c.b16 %v610, %v608
  %v665 = vpack.c.b16 %v613, %v611
  %v666 = vpack.c.b16 %v614, %v612
  %v667 = vpack.c.b16 %v617, %v615
  %v668 = vpack.c.b16 %v618, %v616
  %v669 = vpack.c.b16 %v621, %v619
  %v670 = vpack.c.b16 %v622, %v620
  %v671 = vpack.c.b16 %v625, %v623
  %v672 = vpack.c.b16 %v626, %v624
  %v673 = vpack.c.b16 %v629, %v627
  %v674 = vpack.c.b16 %v630, %v628
  %v675 = vpack.c.b16 %v633, %v631
  %v676 = vpack.c.b16 %v634, %v632
  %v677 = vpack.c.b16 %v637, %v635
  %v678 = vpack.c.b16 %v638, %v636
  %v679 = vpack.c.b16 %v641, %v639
  %v680 = vpack.c.b16 %v642, %v640
  %v681 = vpack.c.b16 %v645, %v643
  %v682 = vpack.c.b16 %v646, %v644
  %v683 = vpack.c.b16 %v649, %v647
  %v684 = vpack.c.b16 %v650, %v648
  %v685 = vpack.c.b16 %v653, %v651
  %v686 = vpack.c.b16 %v654, %v652
  %719 = vmatprep.subr.bf16.mxu0 %v656
  %720 = vmatpush1.bf16.msra.mxu0 %v655
  %721 = vmatprep.subr.bf16.mxu0 %v658
  %722 = vmatpush1.bf16.msra.mxu0 %v657
  %723 = vmatprep.subr.bf16.mxu0 %v660
  %724 = vmatpush1.bf16.msra.mxu0 %v659
  %725 = vmatprep.subr.bf16.mxu0 %v662
  %726 = vmatpush1.bf16.msra.mxu0 %v661
  %727 = vmatprep.subr.bf16.mxu0 %v664
  %728 = vmatpush1.bf16.msra.mxu0 %v663
  %729 = vmatprep.subr.bf16.mxu0 %v666
  %730 = vmatpush1.bf16.msra.mxu0 %v665
  %731 = vmatprep.subr.bf16.mxu0 %v668
  %732 = vmatpush1.bf16.msra.mxu0 %v667
  %733 = vmatprep.subr.bf16.mxu0 %v670
  %734 = vmatpush1.bf16.msra.mxu0 %v669
  %735 = vmatprep.subr.bf16.mxu0 %v672
  %736 = vmatpush1.bf16.msra.mxu0 %v671
  %737 = vmatprep.subr.bf16.mxu0 %v674
  %738 = vmatpush1.bf16.msra.mxu0 %v673
  %739 = vmatprep.subr.bf16.mxu0 %v676
  %740 = vmatpush1.bf16.msra.mxu0 %v675
  %741 = vmatprep.subr.bf16.mxu0 %v678
  %742 = vmatpush1.bf16.msra.mxu0 %v677
  %743 = vmatprep.subr.bf16.mxu0 %v680
  %744 = vmatpush1.bf16.msra.mxu0 %v679
  %745 = vmatprep.subr.bf16.mxu0 %v682
  %746 = vmatpush1.bf16.msra.mxu0 %v681
  %747 = vmatprep.subr.bf16.mxu0 %v684
  %748 = vmatpush1.bf16.msra.mxu0 %v683
  %749 = vmatprep.subr.bf16.mxu0 %v686
  %750 = vmatpush1.bf16.msra.mxu0 %v685
  %751 = vmatprep.mubr.bf16.mxu0 %v478
  %752 = vmatmul.mubr.bf16.gmra.mrb[0].mxu0 %v477
  %v753 = vpop.f32.mrb[0].mxu0
  %v754 = vadd.f32 %v552, %v753
  %v755 = vpop.f32.mrb[0].mxu0
  %v756 = vadd.f32 %v556, %v755
  %v757 = vpop.f32.mrb[0].mxu0
  %v758 = vadd.f32 %v552, %v757
  %v759 = vpop.f32.mrb[0].mxu0
  %v760 = vadd.f32 %v556, %v759
  %761 = vmatprep.mubr.bf16.mxu0 %v480
  %762 = vmatmul.mubr.bf16.gmra.mrb[0].mxu0 %v479
  %v763 = vpop.f32.mrb[0].mxu0
  %v764 = vadd.f32 %v552, %v763
  %v765 = vpop.f32.mrb[0].mxu0
  %v766 = vadd.f32 %v556, %v765
  %v767 = vpop.f32.mrb[0].mxu0
  %v768 = vadd.f32 %v552, %v767
  %v769 = vpop.f32.mrb[0].mxu0
  %v770 = vadd.f32 %v556, %v769
  %771 = vmatprep.mubr.bf16.mxu0 %v482
  %772 = vmatmul.mubr.bf16.gmra.mrb[0].mxu0 %v481
  %v773 = vpop.f32.mrb[0].mxu0
  %v774 = vadd.f32 %v552, %v773
  %v775 = vpop.f32.mrb[0].mxu0
  %v776 = vadd.f32 %v556, %v775
  %v777 = vpop.f32.mrb[0].mxu0
  %v778 = vadd.f32 %v552, %v777
  %v779 = vpop.f32.mrb[0].mxu0
  %v780 = vadd.f32 %v556, %v779
  %781 = vmatprep.mubr.bf16.mxu0 %v484
  %782 = vmatmul.mubr.bf16.gmra.mrb[0].mxu0 %v483
  %v783 = vpop.f32.mrb[0].mxu0
  %v784 = vadd.f32 %v552, %v783
  %v785 = vpop.f32.mrb[0].mxu0
  %v786 = vadd.f32 %v556, %v785
  %v787 = vpop.f32.mrb[0].mxu0
  %v788 = vadd.f32 %v552, %v787
  %v789 = vpop.f32.mrb[0].mxu0
  %v790 = vadd.f32 %v556, %v789
  %791 = vmatprep.mubr.bf16.mxu0 %v486
  %792 = vmatmul.mubr.bf16.gmra.mrb[0].mxu0 %v485
  %v793 = vpop.f32.mrb[0].mxu0
  %v794 = vadd.f32 %v552, %v793
  %v795 = vpop.f32.mrb[0].mxu0
  %v796 = vadd.f32 %v556, %v795
  %v797 = vpop.f32.mrb[0].mxu0
  %v798 = vadd.f32 %v552, %v797
  %v799 = vpop.f32.mrb[0].mxu0
  %v800 = vadd.f32 %v556, %v799
  %801 = vmatprep.mubr.bf16.mxu0 %v488
  %802 = vmatmul.mubr.bf16.gmra.mrb[0].mxu0 %v487
  %v803 = vpop.f32.mrb[0].mxu0
  %v804 = vadd.f32 %v552, %v803
  %v805 = vpop.f32.mrb[0].mxu0
  %v806 = vadd.f32 %v556, %v805
  %v807 = vpop.f32.mrb[0].mxu0
  %v808 = vadd.f32 %v552, %v807
  %v809 = vpop.f32.mrb[0].mxu0
  %v810 = vadd.f32 %v556, %v809
  %811 = vmatprep.mubr.bf16.mxu0 %v490
  %812 = vmatmul.mubr.bf16.gmra.mrb[0].mxu0 %v489
  %v813 = vpop.f32.mrb[0].mxu0
  %v814 = vadd.f32 %v552, %v813
  %v815 = vpop.f32.mrb[0].mxu0
  %v816 = vadd.f32 %v556, %v815
  %v817 = vpop.f32.mrb[0].mxu0
  %v818 = vadd.f32 %v552, %v817
  %v819 = vpop.f32.mrb[0].mxu0
  %v820 = vadd.f32 %v556, %v819
  %821 = vmatprep.mubr.bf16.mxu0 %v492
  %822 = vmatmul.mubr.bf16.gmra.mrb[0].mxu0 %v491
  %v823 = vpop.f32.mrb[0].mxu0
  %v824 = vadd.f32 %v552, %v823
  %v825 = vpop.f32.mrb[0].mxu0
  %v826 = vadd.f32 %v556, %v825
  %v827 = vpop.f32.mrb[0].mxu0
  %v828 = vadd.f32 %v552, %v827
  %v829 = vpop.f32.mrb[0].mxu0
  %v830 = vadd.f32 %v556, %v829
  %831 = vmatprep.mubr.bf16.mxu0 %v494
  %832 = vmatmul.mubr.bf16.gmra.mrb[0].mxu0 %v493
  %v833 = vpop.f32.mrb[0].mxu0
  %v834 = vadd.f32 %v552, %v833
  %v835 = vpop.f32.mrb[0].mxu0
  %v836 = vadd.f32 %v556, %v835
  %v837 = vpop.f32.mrb[0].mxu0
  %v838 = vadd.f32 %v552, %v837
  %v839 = vpop.f32.mrb[0].mxu0
  %v840 = vadd.f32 %v556, %v839
  %841 = vmatprep.mubr.bf16.mxu0 %v496
  %842 = vmatmul.mubr.bf16.gmra.mrb[0].mxu0 %v495
  %v843 = vpop.f32.mrb[0].mxu0
  %v844 = vadd.f32 %v552, %v843
  %v845 = vpop.f32.mrb[0].mxu0
  %v846 = vadd.f32 %v556, %v845
  %v847 = vpop.f32.mrb[0].mxu0
  %v848 = vadd.f32 %v552, %v847
  %v849 = vpop.f32.mrb[0].mxu0
  %v850 = vadd.f32 %v556, %v849
  %851 = vmatprep.mubr.bf16.mxu0 %v498
  %852 = vmatmul.mubr.bf16.gmra.mrb[0].mxu0 %v497
  %v853 = vpop.f32.mrb[0].mxu0
  %v854 = vadd.f32 %v552, %v853
  %v855 = vpop.f32.mrb[0].mxu0
  %v856 = vadd.f32 %v556, %v855
  %v857 = vpop.f32.mrb[0].mxu0
  %v858 = vadd.f32 %v552, %v857
  %v859 = vpop.f32.mrb[0].mxu0
  %v860 = vadd.f32 %v556, %v859
  %861 = vmatprep.mubr.bf16.mxu0 %v500
  %862 = vmatmul.mubr.bf16.gmra.mrb[0].mxu0 %v499
  %v863 = vpop.f32.mrb[0].mxu0
  %v864 = vadd.f32 %v552, %v863
  %v865 = vpop.f32.mrb[0].mxu0
  %v866 = vadd.f32 %v556, %v865
  %v867 = vpop.f32.mrb[0].mxu0
  %v868 = vadd.f32 %v552, %v867
  %v869 = vpop.f32.mrb[0].mxu0
  %v870 = vadd.f32 %v556, %v869
  %871 = vmatprep.mubr.bf16.mxu0 %v502
  %872 = vmatmul.mubr.bf16.gmra.mrb[0].mxu0 %v501
  %v873 = vpop.f32.mrb[0].mxu0
  %v874 = vadd.f32 %v552, %v873
  %v875 = vpop.f32.mrb[0].mxu0
  %v876 = vadd.f32 %v556, %v875
  %v877 = vpop.f32.mrb[0].mxu0
  %v878 = vadd.f32 %v552, %v877
  %v879 = vpop.f32.mrb[0].mxu0
  %v880 = vadd.f32 %v556, %v879
  %881 = vmatprep.mubr.bf16.mxu0 %v504
  %882 = vmatmul.mubr.bf16.gmra.mrb[0].mxu0 %v503
  %v883 = vpop.f32.mrb[0].mxu0
  %v884 = vadd.f32 %v552, %v883
  %v885 = vpop.f32.mrb[0].mxu0
  %v886 = vadd.f32 %v556, %v885
  %v887 = vpop.f32.mrb[0].mxu0
  %v888 = vadd.f32 %v552, %v887
  %v889 = vpop.f32.mrb[0].mxu0
  %v890 = vadd.f32 %v556, %v889
  %891 = vmatprep.mubr.bf16.mxu0 %v506
  %892 = vmatmul.mubr.bf16.gmra.mrb[0].mxu0 %v505
  %v893 = vpop.f32.mrb[0].mxu0
  %v894 = vadd.f32 %v552, %v893
  %v895 = vpop.f32.mrb[0].mxu0
  %v896 = vadd.f32 %v556, %v895
  %v897 = vpop.f32.mrb[0].mxu0
  %v898 = vadd.f32 %v552, %v897
  %v899 = vpop.f32.mrb[0].mxu0
  %v900 = vadd.f32 %v556, %v899
  %901 = vmatprep.mubr.bf16.mxu0 %v508
  %902 = vmatmul.mubr.bf16.gmra.mrb[0].mxu0 %v507
  %v903 = vpop.f32.mrb[0].mxu0
  %v904 = vadd.f32 %v552, %v903
  %v905 = vpop.f32.mrb[0].mxu0
  %v906 = vadd.f32 %v556, %v905
  %v907 = vpop.f32.mrb[0].mxu0
  %v908 = vadd.f32 %v552, %v907
  %v909 = vpop.f32.mrb[0].mxu0
  %v910 = vadd.f32 %v556, %v909
  %911 = vmatprep.mubr.bf16.mxu0 %v510
  %912 = vmatmul.mubr.bf16.gmra.mrb[0].mxu0 %v509
  %v913 = vpop.f32.mrb[0].mxu0
  %v914 = vadd.f32 %v552, %v913
  %v915 = vpop.f32.mrb[0].mxu0
  %v916 = vadd.f32 %v556, %v915
  %v917 = vpop.f32.mrb[0].mxu0
  %v918 = vadd.f32 %v552, %v917
  %v919 = vpop.f32.mrb[0].mxu0
  %v920 = vadd.f32 %v556, %v919
  %921 = vmatprep.mubr.bf16.mxu0 %v512
  %922 = vmatmul.mubr.bf16.gmra.mrb[0].mxu0 %v511
  %v923 = vpop.f32.mrb[0].mxu0
  %v924 = vadd.f32 %v552, %v923
  %v925 = vpop.f32.mrb[0].mxu0
  %v926 = vadd.f32 %v556, %v925
  %v927 = vpop.f32.mrb[0].mxu0
  %v928 = vadd.f32 %v552, %v927
  %v929 = vpop.f32.mrb[0].mxu0
  %v930 = vadd.f32 %v556, %v929
  %931 = vmatprep.mubr.bf16.mxu0 %v514
  %932 = vmatmul.mubr.bf16.gmra.mrb[0].mxu0 %v513
  %v933 = vpop.f32.mrb[0].mxu0
  %v934 = vadd.f32 %v552, %v933
  %v935 = vpop.f32.mrb[0].mxu0
  %v936 = vadd.f32 %v556, %v935
  %v937 = vpop.f32.mrb[0].mxu0
  %v938 = vadd.f32 %v552, %v937
  %v939 = vpop.f32.mrb[0].mxu0
  %v940 = vadd.f32 %v556, %v939
  %941 = vdwg.mxu0
  %v942 = vmax.f32 %v754, 0.0
  %v943 = vmax.f32 %v756, 0.0
  %v944 = vmax.f32 %v758, 0.0
  %v945 = vmax.f32 %v760, 0.0
  %v946 = vmax.f32 %v764, 0.0
  %v947 = vmax.f32 %v766, 0.0
  %v948 = vmax.f32 %v768, 0.0
  %v949 = vmax.f32 %v770, 0.0
  %v950 = vmax.f32 %v774, 0.0
  %v951 = vmax.f32 %v776, 0.0
  %v952 = vmax.f32 %v778, 0.0
  %v953 = vmax.f32 %v780, 0.0
  %v954 = vmax.f32 %v784, 0.0
  %v955 = vmax.f32 %v786, 0.0
  %v956 = vmax.f32 %v788, 0.0
  %v957 = vmax.f32 %v790, 0.0
  %v958 = vmax.f32 %v794, 0.0
  %v959 = vmax.f32 %v796, 0.0
  %v960 = vmax.f32 %v798, 0.0
  %v961 = vmax.f32 %v800, 0.0
  %v962 = vmax.f32 %v804, 0.0
  %v963 = vmax.f32 %v806, 0.0
  %v964 = vmax.f32 %v808, 0.0
  %v965 = vmax.f32 %v810, 0.0
  %v966 = vmax.f32 %v814, 0.0
  %v967 = vmax.f32 %v816, 0.0
  %v968 = vmax.f32 %v818, 0.0
  %v969 = vmax.f32 %v820, 0.0
  %v970 = vmax.f32 %v824, 0.0
  %v971 = vmax.f32 %v826, 0.0
  %v972 = vmax.f32 %v828, 0.0
  %v973 = vmax.f32 %v830, 0.0
  %v974 = vmax.f32 %v834, 0.0
  %v975 = vmax.f32 %v836, 0.0
  %v976 = vmax.f32 %v838, 0.0
  %v977 = vmax.f32 %v840, 0.0
  %v978 = vmax.f32 %v844, 0.0
  %v979 = vmax.f32 %v846, 0.0
  %v980 = vmax.f32 %v848, 0.0
  %v981 = vmax.f32 %v850, 0.0
  %v982 = vmax.f32 %v854, 0.0
  %v983 = vmax.f32 %v856, 0.0
  %v984 = vmax.f32 %v858, 0.0
  %v985 = vmax.f32 %v860, 0.0
  %v986 = vmax.f32 %v864, 0.0
  %v987 = vmax.f32 %v866, 0.0
  %v988 = vmax.f32 %v868, 0.0
  %v989 = vmax.f32 %v870, 0.0
  %v990 = vmax.f32 %v874, 0.0
  %v991 = vmax.f32 %v876, 0.0
  %v992 = vmax.f32 %v878, 0.0
  %v993 = vmax.f32 %v880, 0.0
  %v994 = vmax.f32 %v884, 0.0
  %v995 = vmax.f32 %v886, 0.0
  %v996 = vmax.f32 %v888, 0.0
  %v997 = vmax.f32 %v890, 0.0
  %v998 = vmax.f32 %v894, 0.0
  %v999 = vmax.f32 %v896, 0.0
  %v1000 = vmax.f32 %v898, 0.0
  %v1001 = vmax.f32 %v900, 0.0
  %v1002 = vmax.f32 %v904, 0.0
  %v1003 = vmax.f32 %v906, 0.0
  %v1004 = vmax.f32 %v908, 0.0
  %v1005 = vmax.f32 %v910, 0.0
  %v1006 = vmax.f32 %v914, 0.0
  %v1007 = vmax.f32 %v916, 0.0
  %v1008 = vmax.f32 %v918, 0.0
  %v1009 = vmax.f32 %v920, 0.0
  %v1010 = vmax.f32 %v924, 0.0
  %v1011 = vmax.f32 %v926, 0.0
  %v1012 = vmax.f32 %v928, 0.0
  %v1013 = vmax.f32 %v930, 0.0
  %v1014 = vmax.f32 %v934, 0.0
  %v1015 = vmax.f32 %v936, 0.0
  %v1016 = vmax.f32 %v938, 0.0
  %v1017 = vmax.f32 %v940, 0.0
  %v1018 = vpack.c.bf16 %v944, %v942
  %v1019 = vpack.c.bf16 %v945, %v943
  %v1020 = vpack.c.bf16 %v948, %v946
  %v1021 = vpack.c.bf16 %v949, %v947
  %v1022 = vpack.c.bf16 %v952, %v950
  %v1023 = vpack.c.bf16 %v953, %v951
  %v1024 = vpack.c.bf16 %v956, %v954
  %v1025 = vpack.c.bf16 %v957, %v955
  %v1026 = vpack.c.bf16 %v960, %v958
  %v1027 = vpack.c.bf16 %v961, %v959
  %v1028 = vpack.c.bf16 %v964, %v962
  %v1029 = vpack.c.bf16 %v965, %v963
  %v1030 = vpack.c.bf16 %v968, %v966
  %v1031 = vpack.c.bf16 %v969, %v967
  %v1032 = vpack.c.bf16 %v972, %v970
  %v1033 = vpack.c.bf16 %v973, %v971
  %v1034 = vpack.c.bf16 %v976, %v974
  %v1035 = vpack.c.bf16 %v977, %v975
  %v1036 = vpack.c.bf16 %v980, %v978
  %v1037 = vpack.c.bf16 %v981, %v979
  %v1038 = vpack.c.bf16 %v984, %v982
  %v1039 = vpack.c.bf16 %v985, %v983
  %v1040 = vpack.c.bf16 %v988, %v986
  %v1041 = vpack.c.bf16 %v989, %v987
  %v1042 = vpack.c.bf16 %v992, %v990
  %v1043 = vpack.c.bf16 %v993, %v991
  %v1044 = vpack.c.bf16 %v996, %v994
  %v1045 = vpack.c.bf16 %v997, %v995
  %v1046 = vpack.c.bf16 %v1000, %v998
  %v1047 = vpack.c.bf16 %v1001, %v999
  %v1048 = vpack.c.bf16 %v1004, %v1002
  %v1049 = vpack.c.bf16 %v1005, %v1003
  %v1050 = vpack.c.bf16 %v1008, %v1006
  %v1051 = vpack.c.bf16 %v1009, %v1007
  %v1052 = vpack.c.bf16 %v1012, %v1010
  %v1053 = vpack.c.bf16 %v1013, %v1011
  %v1054 = vpack.c.bf16 %v1016, %v1014
  %v1055 = vpack.c.bf16 %v1017, %v1015
  %v1056 = vld [vmem:[%s5] sm:$0xf]
  %v1057 = vld [vmem:[%s5 + $0x4] sm:$0xf]
  %v1058 = vld [vmem:[%s5 + $0x8] sm:$0xf]
  %v1059 = vld [vmem:[%s5 + $0xc] sm:$0xf]
  %v1060 = vld [vmem:[%s5 + $0x10] sm:$0xf]
  %v1061 = vld [vmem:[%s5 + $0x14] sm:$0xf]
  %v1062 = vld [vmem:[%s5 + $0x18] sm:$0xf]
  %v1063 = vld [vmem:[%s5 + $0x1c] sm:$0xf]
  %v1064 = vld [vmem:[%s5 + $0x20] sm:$0xf]
  %v1065 = vld [vmem:[%s5 + $0x24] sm:$0xf]
  %v1066 = vld [vmem:[%s5 + $0x28] sm:$0xf]
  %v1067 = vld [vmem:[%s5 + $0x2c] sm:$0xf]
  %v1068 = vld [vmem:[%s5 + $0x30] sm:$0xf]
  %v1069 = vld [vmem:[%s5 + $0x34] sm:$0xf]
  %v1070 = vld [vmem:[%s5 + $0x38] sm:$0xf]
  %v1071 = vld [vmem:[%s5 + $0x3c] sm:$0xf]
  %v1072 = vld [vmem:[%s5 + $0x40] sm:$0xf]
  %v1073 = vld [vmem:[%s5 + $0x44] sm:$0xf]
  %v1074 = vld [vmem:[%s5 + $0x48] sm:$0xf]
  %v1075 = vld [vmem:[%s5 + $0x4c] sm:$0xf]
  %v1076 = vld [vmem:[%s5 + $0x50] sm:$0xf]
  %v1077 = vld [vmem:[%s5 + $0x54] sm:$0xf]
  %v1078 = vld [vmem:[%s5 + $0x58] sm:$0xf]
  %v1079 = vld [vmem:[%s5 + $0x5c] sm:$0xf]
  %v1080 = vld [vmem:[%s5 + $0x60] sm:$0xf]
  %v1081 = vld [vmem:[%s5 + $0x64] sm:$0xf]
  %v1082 = vld [vmem:[%s5 + $0x68] sm:$0xf]
  %v1083 = vld [vmem:[%s5 + $0x6c] sm:$0xf]
  %v1084 = vld [vmem:[%s5 + $0x70] sm:$0xf]
  %v1085 = vld [vmem:[%s5 + $0x74] sm:$0xf]
  %v1086 = vld [vmem:[%s5 + $0x78] sm:$0xf]
  %v1087 = vld [vmem:[%s5 + $0x7c] sm:$0xf]
  %v1088 = vld [vmem:[%s6] sm:$0x1]
  %v1090 = vlaneseq
  %v1091 = vshrl.u32 %v1090, 7
  %v1092 = vsub.s32 0, %v1091
  %v1093 = vrot.slane %v1088, %v1092
  %v1127 = vunpack.c.l.b16 %v1056
  %v1128 = vunpack.c.l.b16 %v1057
  %v1129 = vunpack.c.l.b16 %v1058
  %v1130 = vunpack.c.l.b16 %v1059
  %v1131 = vunpack.c.l.b16 %v1060
  %v1132 = vunpack.c.l.b16 %v1061
  %v1133 = vunpack.c.l.b16 %v1062
  %v1134 = vunpack.c.l.b16 %v1063
  %v1135 = vunpack.c.l.b16 %v1064
  %v1136 = vunpack.c.l.b16 %v1065
  %v1137 = vunpack.c.l.b16 %v1066
  %v1138 = vunpack.c.l.b16 %v1067
  %v1139 = vunpack.c.l.b16 %v1068
  %v1140 = vunpack.c.l.b16 %v1069
  %v1141 = vunpack.c.l.b16 %v1070
  %v1142 = vunpack.c.l.b16 %v1071
  %v1143 = vunpack.c.l.b16 %v1072
  %v1144 = vunpack.c.l.b16 %v1073
  %v1145 = vunpack.c.l.b16 %v1074
  %v1146 = vunpack.c.l.b16 %v1075
  %v1147 = vunpack.c.l.b16 %v1076
  %v1148 = vunpack.c.l.b16 %v1077
  %v1149 = vunpack.c.l.b16 %v1078
  %v1150 = vunpack.c.l.b16 %v1079
  %v1151 = vunpack.c.l.b16 %v1080
  %v1152 = vunpack.c.l.b16 %v1081
  %v1153 = vunpack.c.l.b16 %v1082
  %v1154 = vunpack.c.l.b16 %v1083
  %v1155 = vunpack.c.l.b16 %v1084
  %v1156 = vunpack.c.l.b16 %v1085
  %v1157 = vunpack.c.l.b16 %v1086
  %v1158 = vunpack.c.l.b16 %v1087
  %v1159 = vpack.c.b16 %v1128, %v1127
  %v1160 = vpack.c.b16 %v1130, %v1129
  %v1161 = vpack.c.b16 %v1132, %v1131
  %v1162 = vpack.c.b16 %v1134, %v1133
  %v1163 = vpack.c.b16 %v1136, %v1135
  %v1164 = vpack.c.b16 %v1138, %v1137
  %v1165 = vpack.c.b16 %v1140, %v1139
  %v1166 = vpack.c.b16 %v1142, %v1141
  %v1167 = vpack.c.b16 %v1144, %v1143
  %v1168 = vpack.c.b16 %v1146, %v1145
  %v1169 = vpack.c.b16 %v1148, %v1147
  %v1170 = vpack.c.b16 %v1150, %v1149
  %v1171 = vpack.c.b16 %v1152, %v1151
  %v1172 = vpack.c.b16 %v1154, %v1153
  %v1173 = vpack.c.b16 %v1156, %v1155
  %v1174 = vpack.c.b16 %v1158, %v1157
  %1191 = vmatprep.subr.bf16.mxu0 0
  %1192 = vmatpush1.bf16.msra.mxu0 %v1159
  %1193 = vmatprep.subr.bf16.mxu0 0
  %1194 = vmatpush1.bf16.msra.mxu0 %v1160
  %1195 = vmatprep.subr.bf16.mxu0 0
  %1196 = vmatpush1.bf16.msra.mxu0 %v1161
  %1197 = vmatprep.subr.bf16.mxu0 0
  %1198 = vmatpush1.bf16.msra.mxu0 %v1162
  %1199 = vmatprep.subr.bf16.mxu0 0
  %1200 = vmatpush1.bf16.msra.mxu0 %v1163
  %1201 = vmatprep.subr.bf16.mxu0 0
  %1202 = vmatpush1.bf16.msra.mxu0 %v1164
  %1203 = vmatprep.subr.bf16.mxu0 0
  %1204 = vmatpush1.bf16.msra.mxu0 %v1165
  %1205 = vmatprep.subr.bf16.mxu0 0
  %1206 = vmatpush1.bf16.msra.mxu0 %v1166
  %1207 = vmatprep.subr.bf16.mxu0 0
  %1208 = vmatpush1.bf16.msra.mxu0 %v1167
  %1209 = vmatprep.subr.bf16.mxu0 0
  %1210 = vmatpush1.bf16.msra.mxu0 %v1168
  %1211 = vmatprep.subr.bf16.mxu0 0
  %1212 = vmatpush1.bf16.msra.mxu0 %v1169
  %1213 = vmatprep.subr.bf16.mxu0 0
  %1214 = vmatpush1.bf16.msra.mxu0 %v1170
  %1215 = vmatprep.subr.bf16.mxu0 0
  %1216 = vmatpush1.bf16.msra.mxu0 %v1171
  %1217 = vmatprep.subr.bf16.mxu0 0
  %1218 = vmatpush1.bf16.msra.mxu0 %v1172
  %1219 = vmatprep.subr.bf16.mxu0 0
  %1220 = vmatpush1.bf16.msra.mxu0 %v1173
  %1221 = vmatprep.subr.bf16.mxu0 0
  %1222 = vmatpush1.bf16.msra.mxu0 %v1174
  %1223 = vmatprep.mubr.bf16.mxu0 %v1019
  %1224 = vmatmul.mubr.bf16.gmra.mrb[0].mxu0 %v1018
  %v1225 = vpop.f32.mrb[0].mxu0
  %v1226 = vadd.f32 %v1093, %v1225
  %v1227 = vpop.f32.mrb[0].mxu0
  %v1228 = vpop.f32.mrb[0].mxu0
  %v1229 = vadd.f32 %v1093, %v1228
  %v1230 = vpop.f32.mrb[0].mxu0
  %1231 = vmatprep.mubr.bf16.mxu0 %v1021
  %1232 = vmatmul.mubr.bf16.gmra.mrb[0].mxu0 %v1020
  %v1233 = vpop.f32.mrb[0].mxu0
  %v1234 = vadd.f32 %v1093, %v1233
  %v1235 = vpop.f32.mrb[0].mxu0
  %v1236 = vpop.f32.mrb[0].mxu0
  %v1237 = vadd.f32 %v1093, %v1236
  %v1238 = vpop.f32.mrb[0].mxu0
  %1239 = vmatprep.mubr.bf16.mxu0 %v1023
  %1240 = vmatmul.mubr.bf16.gmra.mrb[0].mxu0 %v1022
  %v1241 = vpop.f32.mrb[0].mxu0
  %v1242 = vadd.f32 %v1093, %v1241
  %v1243 = vpop.f32.mrb[0].mxu0
  %v1244 = vpop.f32.mrb[0].mxu0
  %v1245 = vadd.f32 %v1093, %v1244
  %v1246 = vpop.f32.mrb[0].mxu0
  %1247 = vmatprep.mubr.bf16.mxu0 %v1025
  %1248 = vmatmul.mubr.bf16.gmra.mrb[0].mxu0 %v1024
  %v1249 = vpop.f32.mrb[0].mxu0
  %v1250 = vadd.f32 %v1093, %v1249
  %v1251 = vpop.f32.mrb[0].mxu0
  %v1252 = vpop.f32.mrb[0].mxu0
  %v1253 = vadd.f32 %v1093, %v1252
  %v1254 = vpop.f32.mrb[0].mxu0
  %1255 = vmatprep.mubr.bf16.mxu0 %v1027
  %1256 = vmatmul.mubr.bf16.gmra.mrb[0].mxu0 %v1026
  %v1257 = vpop.f32.mrb[0].mxu0
  %v1258 = vadd.f32 %v1093, %v1257
  %v1259 = vpop.f32.mrb[0].mxu0
  %v1260 = vpop.f32.mrb[0].mxu0
  %v1261 = vadd.f32 %v1093, %v1260
  %v1262 = vpop.f32.mrb[0].mxu0
  %1263 = vmatprep.mubr.bf16.mxu0 %v1029
  %1264 = vmatmul.mubr.bf16.gmra.mrb[0].mxu0 %v1028
  %v1265 = vpop.f32.mrb[0].mxu0
  %v1266 = vadd.f32 %v1093, %v1265
  %v1267 = vpop.f32.mrb[0].mxu0
  %v1268 = vpop.f32.mrb[0].mxu0
  %v1269 = vadd.f32 %v1093, %v1268
  %v1270 = vpop.f32.mrb[0].mxu0
  %1271 = vmatprep.mubr.bf16.mxu0 %v1031
  %1272 = vmatmul.mubr.bf16.gmra.mrb[0].mxu0 %v1030
  %v1273 = vpop.f32.mrb[0].mxu0
  %v1274 = vadd.f32 %v1093, %v1273
  %v1275 = vpop.f32.mrb[0].mxu0
  %v1276 = vpop.f32.mrb[0].mxu0
  %v1277 = vadd.f32 %v1093, %v1276
  %v1278 = vpop.f32.mrb[0].mxu0
  %1279 = vmatprep.mubr.bf16.mxu0 %v1033
  %1280 = vmatmul.mubr.bf16.gmra.mrb[0].mxu0 %v1032
  %v1281 = vpop.f32.mrb[0].mxu0
  %v1282 = vadd.f32 %v1093, %v1281
  %v1283 = vpop.f32.mrb[0].mxu0
  %v1284 = vpop.f32.mrb[0].mxu0
  %v1285 = vadd.f32 %v1093, %v1284
  %v1286 = vpop.f32.mrb[0].mxu0
  %1287 = vmatprep.mubr.bf16.mxu0 %v1035
  %1288 = vmatmul.mubr.bf16.gmra.mrb[0].mxu0 %v1034
  %v1289 = vpop.f32.mrb[0].mxu0
  %v1290 = vadd.f32 %v1093, %v1289
  %v1291 = vpop.f32.mrb[0].mxu0
  %v1292 = vpop.f32.mrb[0].mxu0
  %v1293 = vadd.f32 %v1093, %v1292
  %v1294 = vpop.f32.mrb[0].mxu0
  %1295 = vmatprep.mubr.bf16.mxu0 %v1037
  %1296 = vmatmul.mubr.bf16.gmra.mrb[0].mxu0 %v1036
  %v1297 = vpop.f32.mrb[0].mxu0
  %v1298 = vadd.f32 %v1093, %v1297
  %v1299 = vpop.f32.mrb[0].mxu0
  %v1300 = vpop.f32.mrb[0].mxu0
  %v1301 = vadd.f32 %v1093, %v1300
  %v1302 = vpop.f32.mrb[0].mxu0
  %1303 = vmatprep.mubr.bf16.mxu0 %v1039
  %1304 = vmatmul.mubr.bf16.gmra.mrb[0].mxu0 %v1038
  %v1305 = vpop.f32.mrb[0].mxu0
  %v1306 = vadd.f32 %v1093, %v1305
  %v1307 = vpop.f32.mrb[0].mxu0
  %v1308 = vpop.f32.mrb[0].mxu0
  %v1309 = vadd.f32 %v1093, %v1308
  %v1310 = vpop.f32.mrb[0].mxu0
  %1311 = vmatprep.mubr.bf16.mxu0 %v1041
  %1312 = vmatmul.mubr.bf16.gmra.mrb[0].mxu0 %v1040
  %v1313 = vpop.f32.mrb[0].mxu0
  %v1314 = vadd.f32 %v1093, %v1313
  %v1315 = vpop.f32.mrb[0].mxu0
  %v1316 = vpop.f32.mrb[0].mxu0
  %v1317 = vadd.f32 %v1093, %v1316
  %v1318 = vpop.f32.mrb[0].mxu0
  %1319 = vmatprep.mubr.bf16.mxu0 %v1043
  %1320 = vmatmul.mubr.bf16.gmra.mrb[0].mxu0 %v1042
  %v1321 = vpop.f32.mrb[0].mxu0
  %v1322 = vadd.f32 %v1093, %v1321
  %v1323 = vpop.f32.mrb[0].mxu0
  %v1324 = vpop.f32.mrb[0].mxu0
  %v1325 = vadd.f32 %v1093, %v1324
  %v1326 = vpop.f32.mrb[0].mxu0
  %1327 = vmatprep.mubr.bf16.mxu0 %v1045
  %1328 = vmatmul.mubr.bf16.gmra.mrb[0].mxu0 %v1044
  %v1329 = vpop.f32.mrb[0].mxu0
  %v1330 = vadd.f32 %v1093, %v1329
  %v1331 = vpop.f32.mrb[0].mxu0
  %v1332 = vpop.f32.mrb[0].mxu0
  %v1333 = vadd.f32 %v1093, %v1332
  %v1334 = vpop.f32.mrb[0].mxu0
  %1335 = vmatprep.mubr.bf16.mxu0 %v1047
  %1336 = vmatmul.mubr.bf16.gmra.mrb[0].mxu0 %v1046
  %v1337 = vpop.f32.mrb[0].mxu0
  %v1338 = vadd.f32 %v1093, %v1337
  %v1339 = vpop.f32.mrb[0].mxu0
  %v1340 = vpop.f32.mrb[0].mxu0
  %v1341 = vadd.f32 %v1093, %v1340
  %v1342 = vpop.f32.mrb[0].mxu0
  %1343 = vmatprep.mubr.bf16.mxu0 %v1049
  %1344 = vmatmul.mubr.bf16.gmra.mrb[0].mxu0 %v1048
  %v1345 = vpop.f32.mrb[0].mxu0
  %v1346 = vadd.f32 %v1093, %v1345
  %v1347 = vpop.f32.mrb[0].mxu0
  %v1348 = vpop.f32.mrb[0].mxu0
  %v1349 = vadd.f32 %v1093, %v1348
  %v1350 = vpop.f32.mrb[0].mxu0
  %1351 = vmatprep.mubr.bf16.mxu0 %v1051
  %1352 = vmatmul.mubr.bf16.gmra.mrb[0].mxu0 %v1050
  %v1353 = vpop.f32.mrb[0].mxu0
  %v1354 = vadd.f32 %v1093, %v1353
  %v1355 = vpop.f32.mrb[0].mxu0
  %v1356 = vpop.f32.mrb[0].mxu0
  %v1357 = vadd.f32 %v1093, %v1356
  %v1358 = vpop.f32.mrb[0].mxu0
  %1359 = vmatprep.mubr.bf16.mxu0 %v1053
  %1360 = vmatmul.mubr.bf16.gmra.mrb[0].mxu0 %v1052
  %v1361 = vpop.f32.mrb[0].mxu0
  %v1362 = vadd.f32 %v1093, %v1361
  %v1363 = vpop.f32.mrb[0].mxu0
  %v1364 = vpop.f32.mrb[0].mxu0
  %v1365 = vadd.f32 %v1093, %v1364
  %v1366 = vpop.f32.mrb[0].mxu0
  %1367 = vmatprep.mubr.bf16.mxu0 %v1055
  %1368 = vmatmul.mubr.bf16.gmra.mrb[0].mxu0 %v1054
  %v1369 = vpop.f32.mrb[0].mxu0
  %v1370 = vadd.f32 %v1093, %v1369
  %v1371 = vpop.f32.mrb[0].mxu0
  %v1372 = vpop.f32.mrb[0].mxu0
  %v1373 = vadd.f32 %v1093, %v1372
  %v1374 = vpop.f32.mrb[0].mxu0
  %1375 = vdwg.mxu0
  %vm1376 = vcmask 64512
  %1377 = vst.msk [vmem:[%s7] sm:$0xff] %vm1376, %v1226
  %1378 = vst.msk [vmem:[%s7 + $0x8] sm:$0xff] %vm1376, %v1229
  %1379 = vst.msk [vmem:[%s7 + $0x10] sm:$0xff] %vm1376, %v1234
  %1380 = vst.msk [vmem:[%s7 + $0x18] sm:$0xff] %vm1376, %v1237
  %1381 = vst.msk [vmem:[%s7 + $0x20] sm:$0xff] %vm1376, %v1242
  %1382 = vst.msk [vmem:[%s7 + $0x28] sm:$0xff] %vm1376, %v1245
  %1383 = vst.msk [vmem:[%s7 + $0x30] sm:$0xff] %vm1376, %v1250
  %1384 = vst.msk [vmem:[%s7 + $0x38] sm:$0xff] %vm1376, %v1253
  %1385 = vst.msk [vmem:[%s7 + $0x40] sm:$0xff] %vm1376, %v1258
  %1386 = vst.msk [vmem:[%s7 + $0x48] sm:$0xff] %vm1376, %v1261
  %1387 = vst.msk [vmem:[%s7 + $0x50] sm:$0xff] %vm1376, %v1266
  %1388 = vst.msk [vmem:[%s7 + $0x58] sm:$0xff] %vm1376, %v1269
  %1389 = vst.msk [vmem:[%s7 + $0x60] sm:$0xff] %vm1376, %v1274
  %1390 = vst.msk [vmem:[%s7 + $0x68] sm:$0xff] %vm1376, %v1277
  %1391 = vst.msk [vmem:[%s7 + $0x70] sm:$0xff] %vm1376, %v1282
  %1392 = vst.msk [vmem:[%s7 + $0x78] sm:$0xff] %vm1376, %v1285
  %1393 = vst.msk [vmem:[%s7 + $0x80] sm:$0xff] %vm1376, %v1290
  %1394 = vst.msk [vmem:[%s7 + $0x88] sm:$0xff] %vm1376, %v1293
  %1395 = vst.msk [vmem:[%s7 + $0x90] sm:$0xff] %vm1376, %v1298
  %1396 = vst.msk [vmem:[%s7 + $0x98] sm:$0xff] %vm1376, %v1301
  %1397 = vst.msk [vmem:[%s7 + $0xa0] sm:$0xff] %vm1376, %v1306
  %1398 = vst.msk [vmem:[%s7 + $0xa8] sm:$0xff] %vm1376, %v1309
  %1399 = vst.msk [vmem:[%s7 + $0xb0] sm:$0xff] %vm1376, %v1314
  %1400 = vst.msk [vmem:[%s7 + $0xb8] sm:$0xff] %vm1376, %v1317
  %1401 = vst.msk [vmem:[%s7 + $0xc0] sm:$0xff] %vm1376, %v1322
  %1402 = vst.msk [vmem:[%s7 + $0xc8] sm:$0xff] %vm1376, %v1325
  %1403 = vst.msk [vmem:[%s7 + $0xd0] sm:$0xff] %vm1376, %v1330
  %1404 = vst.msk [vmem:[%s7 + $0xd8] sm:$0xff] %vm1376, %v1333
  %1405 = vst.msk [vmem:[%s7 + $0xe0] sm:$0xff] %vm1376, %v1338
  %1406 = vst.msk [vmem:[%s7 + $0xe8] sm:$0xff] %vm1376, %v1341
  %1407 = vst.msk [vmem:[%s7 + $0xf0] sm:$0xff] %vm1376, %v1346
  %1408 = vst.msk [vmem:[%s7 + $0xf8] sm:$0xff] %vm1376, %v1349
  %1409 = vst.msk [vmem:[%s7 + $0x100] sm:$0xff] %vm1376, %v1354
  %1410 = vst.msk [vmem:[%s7 + $0x108] sm:$0xff] %vm1376, %v1357
  %1411 = vst.msk [vmem:[%s7 + $0x110] sm:$0xff] %vm1376, %v1362
  %1412 = vst.msk [vmem:[%s7 + $0x118] sm:$0xff] %vm1376, %v1365
  %1413 = vst.msk [vmem:[%s7 + $0x120] sm:$0xff] %vm1376, %v1370
  %1414 = vst.msk [vmem:[%s7 + $0x128] sm:$0xff] %vm1376, %v1373
  // Predicated region
  $region30: #{mlp_forward.1} parent=0 // pred_check
    _
  $region31: #{mlp_forward.1} parent=0 // pred_check_branch
    %1416 = sbr.rel (0) target = $region33
  $region32: #{mlp_forward.1} parent=0 // pred_region
    _
  $region33: #{mlp_forward.1} parent=0 // pred_fallthru
    _
  // Predicated region
  $region34: #{mlp_forward.1} parent=0 // pred_check
    _
  $region35: #{mlp_forward.1} parent=0 // pred_check_branch
    %1418 = sbr.rel (0) target = $region37
  $region36: #{mlp_forward.1} parent=0 // pred_region
    _
  $region37: #{mlp_forward.1} parent=0 // pred_fallthru
    _

</llo_original>
